<compile_context>
chip_gen: v7x
topology: tpu7x:2x2x1
jax: 0.10.0
libtpu: 0.0.40
codegen_flags: <defaults>
</compile_context>

<pallas_src>
import functools

import jax
import jax.numpy as jnp
from jax.experimental import pallas as pl
from jax.experimental.pallas import tpu as pltpu


def actor_forward_kernel(x_ref, w1_ref, w2_ref, w3_ref, b3_ref, out_ref):
    # Feed the MXU bf16, accumulate in f32.  (astype is a no-op if x is bf16.)
    x = x_ref[...].astype(jnp.bfloat16)

    # Hidden layer 1: Linear (no bias) + ReLU
    h = jnp.dot(x, w1_ref[...], preferred_element_type=jnp.float32)
    h = jnp.maximum(h, 0.0)

    # Hidden layer 2: Linear (no bias) + ReLU
    h = jnp.dot(h.astype(jnp.bfloat16), w2_ref[...],
                preferred_element_type=jnp.float32)
    h = jnp.maximum(h, 0.0)

    # Dropout(p=0.0) is an identity op.

    # Output layer: Linear with bias (f32 bias added after f32 accumulation).
    logits = jnp.dot(h.astype(jnp.bfloat16), w3_ref[...],
                     preferred_element_type=jnp.float32)
    logits = logits + b3_ref[...]

    # Numerically stable softmax over the class axis, f32, exact division
    # (approx reciprocal is not accurate enough for a 1e-3 sum-to-1 check).
    m = jnp.max(logits, axis=-1, keepdims=True)
    e = jnp.exp(logits - m)
    denom = jnp.sum(e, axis=-1, keepdims=True)
    out_ref[...] = (e / denom).astype(out_ref.dtype)


def _round_up(n, m):
    return (n + m - 1) // m * m


def _pick_tb(batch, block_batch):
    """Batch tile size.

    * batch <= 256: one tile covering the whole batch (block dims equal the
      full array dims, so any batch size is legal).
    * batch  > 256: 128-row-multiple tiles (legal with a ragged last block,
      fills the MXU M dim on v5e), sized so there are >= 3-4 tiles for v7x's
      two TensorCores + pipeline depth, capped at block_batch.
    """
    if batch <= 256:
        return batch
    quarter = _round_up(pl.cdiv(batch, 4), 128)
    return max(128, min(_round_up(block_batch, 128), quarter))


@functools.partial(jax.jit, static_argnames=("block_batch",))
def actor_forward(x, w1, w2, w3, b3, *, block_batch=1024):
    """Fused 3-layer MLP + softmax, tiled over the batch dimension."""
    batch, in_dim = x.shape
    h0 = w1.shape[1]
    h1 = w2.shape[1]
    out_dim = w3.shape[1]

    # bf16 weights for the MXU; bias stays f32.
    w1b = w1.astype(jnp.bfloat16)
    w2b = w2.astype(jnp.bfloat16)
    w3b = w3.astype(jnp.bfloat16)
    b3f = b3.reshape(1, out_dim).astype(jnp.float32)

    tb = _pick_tb(batch, block_batch)
    grid = (pl.cdiv(batch, tb),)

    # Weights / bias: full-array blocks with constant index_maps -> stay
    # VMEM-resident; Pallas never re-issues their DMAs across grid steps.
    resident = lambda a: pl.BlockSpec(a.shape, lambda i: (0, 0))

    flops = 2 * batch * (in_dim * h0 + h0 * h1 + h1 * out_dim)
    bytes_accessed = (batch * in_dim * x.dtype.itemsize        # x read
                      + batch * out_dim * 4                    # probs write
                      + (in_dim * h0 + h0 * h1 + h1 * out_dim) * 2  # bf16 weights
                      + out_dim * 4)                           # bias
    cost = pl.CostEstimate(flops=flops,
                           transcendentals=batch * out_dim,
                           bytes_accessed=bytes_accessed)

    out = pl.pallas_call(
        actor_forward_kernel,
        out_shape=jax.ShapeDtypeStruct((batch, out_dim), jnp.float32),
        grid=grid,
        in_specs=[
            pl.BlockSpec((tb, in_dim), lambda i: (i, 0)),   # x: tiled over batch
            resident(w1b),
            resident(w2b),
            resident(w3b),
            resident(b3f),
        ],
        out_specs=pl.BlockSpec((tb, out_dim), lambda i: (i, 0)),
        compiler_params=pltpu.CompilerParams(
            dimension_semantics=("parallel",)),  # shard batch tiles across TCs (v7x)
        cost_estimate=cost,
    )(x, w1b, w2b, w3b, b3f)

    return out  # already exactly (batch, out_dim) -- no slice/pad needed


def init_params(key, input_dim, hidden_dims, output_dim):
    """Deterministic synthetic parameters (PyTorch Linear stores (out,in);
    we store the transpose (in,out) so the kernel computes x @ W)."""
    k1, k2, k3, k4 = jax.random.split(key, 4)
    h0, h1 = hidden_dims
    scale = 0.1
    w1 = scale * jax.random.normal(k1, (input_dim, h0), jnp.float32)
    w2 = scale * jax.random.normal(k2, (h0, h1), jnp.float32)
    w3 = scale * jax.random.normal(k3, (h1, output_dim), jnp.float32)
    b3 = scale * jax.random.normal(k4, (1, output_dim), jnp.float32)
    return w1, w2, w3, b3


def reference_forward(x, w1, w2, w3, b3):
    """Plain-JAX f32 reference for a correctness sanity check."""
    x = x.astype(jnp.float32)
    h = jnp.maximum(x @ w1, 0.0)
    h = jnp.maximum(h @ w2, 0.0)
    logits = h @ w3 + b3
    return jax.nn.softmax(logits, axis=-1)


if __name__ == "__main__":
    key = jax.random.PRNGKey(0)
    k_x, k_p = jax.random.split(key)

    batch = 8
    input_dim = 32
    hidden_dims = [64, 32]
    output_dim = 16

    x = jax.random.normal(k_x, (batch, input_dim), jnp.float32)
    w1, w2, w3, b3 = init_params(k_p, input_dim, hidden_dims, output_dim)

    out = jax.block_until_ready(actor_forward(x, w1, w2, w3, b3))
    ref = reference_forward(x, w1, w2, w3, b3)

    assert out.shape == (batch, output_dim)
    # Exact-division softmax: rows sum to 1 to f32 rounding.
    assert jnp.allclose(jnp.sum(out, axis=-1), 1.0, atol=1e-3), "softmax rows must sum to 1"
    # bf16 MXU matmuls vs f32 reference: observed prob error << 1e-3.
    assert jnp.allclose(out, ref, atol=5e-3, rtol=0.0), "mismatch vs f32 reference"

    print("KERNEL_OK")
</pallas_src>

<mosaic_0001>
module attributes {stable_mosaic.version = 11 : i64} {
  func.func @actor_forward_kernel(%arg0: i32, %arg1: memref<8x32xf32, #tpu.memory_space<vmem>>, %arg2: memref<32x64xbf16, #tpu.memory_space<vmem>>, %arg3: memref<64x32xbf16, #tpu.memory_space<vmem>>, %arg4: memref<32x16xbf16, #tpu.memory_space<vmem>>, %arg5: memref<1x16xf32, #tpu.memory_space<vmem>>, %arg6: memref<8x16xf32, #tpu.memory_space<vmem>>) attributes {dimension_semantics = [#tpu.dimension_semantics<parallel>], iteration_bounds = array<i64: 1>, scalar_prefetch = 0 : i64, scratch_operands = 0 : i64, tpu.core_type = #tpu.core_type<tc>, window_params = [{transform_indices = @transform_0, window_bounds = array<i64: 8, 32>}, {pipeline_mode = #tpu.pipeline_mode<synchronous>, transform_indices = @transform_1, window_bounds = array<i64: 32, 64>}, {pipeline_mode = #tpu.pipeline_mode<synchronous>, transform_indices = @transform_2, window_bounds = array<i64: 64, 32>}, {pipeline_mode = #tpu.pipeline_mode<synchronous>, transform_indices = @transform_3, window_bounds = array<i64: 32, 16>}, {pipeline_mode = #tpu.pipeline_mode<synchronous>, transform_indices = @transform_4, window_bounds = array<i64: 1, 16>}, {transform_indices = @transform_5, window_bounds = array<i64: 8, 16>}]} {
    %c0 = arith.constant 0 : index
    %c0_0 = arith.constant 0 : index
    %0 = vector.load %arg1[%c0, %c0_0] : memref<8x32xf32, #tpu.memory_space<vmem>>, vector<8x32xf32>
    %1 = arith.truncf %0 : vector<8x32xf32> to vector<8x32xbf16>
    %c0_1 = arith.constant 0 : index
    %c0_2 = arith.constant 0 : index
    %2 = vector.load %arg2[%c0_1, %c0_2] : memref<32x64xbf16, #tpu.memory_space<vmem>>, vector<32x64xbf16>
    %cst = arith.constant dense<0.000000e+00> : vector<8x64xf32>
    %3 = tpu.matmul %1, %2, %cst {dimension_numbers = #tpu.dot_dimension_numbers<[1], [0], [0], [1], [0, 0, 1, 1], [], []>} : vector<8x32xbf16>, vector<32x64xbf16>, vector<8x64xf32> -> vector<8x64xf32>
    %cst_3 = arith.constant 0.000000e+00 : f32
    %4 = vector.broadcast %cst_3 : f32 to vector<8x64xf32>
    %5 = arith.maximumf %3, %4 : vector<8x64xf32>
    %6 = arith.truncf %5 : vector<8x64xf32> to vector<8x64xbf16>
    %c0_4 = arith.constant 0 : index
    %c0_5 = arith.constant 0 : index
    %7 = vector.load %arg3[%c0_4, %c0_5] : memref<64x32xbf16, #tpu.memory_space<vmem>>, vector<64x32xbf16>
    %cst_6 = arith.constant dense<0.000000e+00> : vector<8x32xf32>
    %8 = tpu.matmul %6, %7, %cst_6 {dimension_numbers = #tpu.dot_dimension_numbers<[1], [0], [0], [1], [0, 0, 1, 1], [], []>} : vector<8x64xbf16>, vector<64x32xbf16>, vector<8x32xf32> -> vector<8x32xf32>
    %cst_7 = arith.constant 0.000000e+00 : f32
    %9 = vector.broadcast %cst_7 : f32 to vector<8x32xf32>
    %10 = arith.maximumf %8, %9 : vector<8x32xf32>
    %11 = arith.truncf %10 : vector<8x32xf32> to vector<8x32xbf16>
    %c0_8 = arith.constant 0 : index
    %c0_9 = arith.constant 0 : index
    %12 = vector.load %arg4[%c0_8, %c0_9] : memref<32x16xbf16, #tpu.memory_space<vmem>>, vector<32x16xbf16>
    %cst_10 = arith.constant dense<0.000000e+00> : vector<8x16xf32>
    %13 = tpu.matmul %11, %12, %cst_10 {dimension_numbers = #tpu.dot_dimension_numbers<[1], [0], [0], [1], [0, 0, 1, 1], [], []>} : vector<8x32xbf16>, vector<32x16xbf16>, vector<8x16xf32> -> vector<8x16xf32>
    %c0_11 = arith.constant 0 : index
    %c0_12 = arith.constant 0 : index
    %14 = vector.load %arg5[%c0_11, %c0_12] : memref<1x16xf32, #tpu.memory_space<vmem>>, vector<1x16xf32>
    %15 = vector.broadcast %14 : vector<1x16xf32> to vector<8x16xf32>
    %16 = arith.addf %13, %15 : vector<8x16xf32>
    %cst_13 = arith.constant dense<0xFF800000> : vector<8xf32>
    %17 = vector.multi_reduction <maximumf>, %16, %cst_13 [1] : vector<8x16xf32> to vector<8xf32>
    %18 = vector.shape_cast %17 : vector<8xf32> to vector<8x1xf32>
    %19 = vector.broadcast %18 : vector<8x1xf32> to vector<8x16xf32>
    %20 = arith.subf %16, %19 : vector<8x16xf32>
    %21 = math.exp %20 : vector<8x16xf32>
    %cst_14 = arith.constant dense<0.000000e+00> : vector<8xf32>
    %22 = vector.multi_reduction <add>, %21, %cst_14 [1] : vector<8x16xf32> to vector<8xf32>
    %23 = vector.shape_cast %22 : vector<8xf32> to vector<8x1xf32>
    %24 = vector.broadcast %23 : vector<8x1xf32> to vector<8x16xf32>
    %25 = arith.divf %21, %24 : vector<8x16xf32>
    %c0_15 = arith.constant 0 : index
    %c0_16 = arith.constant 0 : index
    %26 = vector.load %arg6[%c0_15, %c0_16] : memref<8x16xf32, #tpu.memory_space<vmem>>, vector<8x16xf32>
    tpu.vector_store %arg6[%c0_15, %c0_16], %25 {strides = array<i32>} : memref<8x16xf32, #tpu.memory_space<vmem>>, vector<8x16xf32>,
    return
  }
  func.func @transform_0(%arg0: i32) -> (i32, i32) {
    %c0_i32 = arith.constant 0 : i32
    %c0_i32_0 = arith.constant 0 : i32
    return %arg0, %c0_i32 : i32, i32
  }
  func.func @transform_1(%arg0: i32) -> (i32, i32) {
    %c0_i32 = arith.constant 0 : i32
    %c0_i32_0 = arith.constant 0 : i32
    %c0_i32_1 = arith.constant 0 : i32
    return %c0_i32, %c0_i32_0 : i32, i32
  }
  func.func @transform_2(%arg0: i32) -> (i32, i32) {
    %c0_i32 = arith.constant 0 : i32
    %c0_i32_0 = arith.constant 0 : i32
    %c0_i32_1 = arith.constant 0 : i32
    return %c0_i32, %c0_i32_0 : i32, i32
  }
  func.func @transform_3(%arg0: i32) -> (i32, i32) {
    %c0_i32 = arith.constant 0 : i32
    %c0_i32_0 = arith.constant 0 : i32
    %c0_i32_1 = arith.constant 0 : i32
    return %c0_i32, %c0_i32_0 : i32, i32
  }
  func.func @transform_4(%arg0: i32) -> (i32, i32) {
    %c0_i32 = arith.constant 0 : i32
    %c0_i32_0 = arith.constant 0 : i32
    %c0_i32_1 = arith.constant 0 : i32
    return %c0_i32, %c0_i32_0 : i32, i32
  }
  func.func @transform_5(%arg0: i32) -> (i32, i32) {
    %c0_i32 = arith.constant 0 : i32
    %c0_i32_0 = arith.constant 0 : i32
    return %arg0, %c0_i32 : i32, i32
  }
}

</mosaic_0001>

<llo_original>
// kernel: actor_forward.1
$region0: #{actor_forward.1}
  #allocation0 [shape = 'u32[]', space=smem, size = 0x4, offset = 0x4, fixed_abs, tag = 'smem constant byte address 0x4 - core index']
  #allocation1 [shape = 'u32[144,128]{1,0:T(1,128)}', space=vmem, size = 0x12000, scoped, tag = 'internal scratch']
  %s0 = inlined_call_operand.vmem [shape: f32[8,32], index: 0, kind: input, shape index: {}]
  %s1 = inlined_call_operand.vmem [shape: bf16[32,64], index: 1, kind: input, shape index: {}]
  %s2 = inlined_call_operand.vmem [shape: bf16[64,32], index: 2, kind: input, shape index: {}]
  %s3 = inlined_call_operand.vmem [shape: bf16[32,16], index: 3, kind: input, shape index: {}]
  %s4 = inlined_call_operand.vmem [shape: f32[1,16], index: 4, kind: input, shape index: {}]
  %s5 = inlined_call_operand.hbm [shape: f32[8,16], index: 5, kind: output, shape index: {}]
  %s6 = sld [smem:[#allocation0]]
  $region30: #{actor_forward.1} parent=0
    _
  %s8 = ssub.s32 1, %s6
  %s9 = scalar_select 0, %s8, %s6
  $region1: #{actor_forward.1} parent=0
    #allocation2 [shape = 'u8[4096]{0}', space=vmem, size = 0x1000, scoped, tag = 'output window, operand 0, single buffered']
    #allocation3 [shape = 's32[1]{0}', space=sflag, size = 0x4, scoped, tag = 'scoped memory for actor_forward.1']
    %10 = vsyncpa [#allocation3], 0
    // Predicated region
    $region2: #{actor_forward.1} parent=1 // pred_check
      _
    $region3: #{actor_forward.1} parent=1 // pred_check_branch
      %12 = sbr.rel (0) target = $region5
    $region4: #{actor_forward.1} parent=1 // pred_region
      _
    $region5: #{actor_forward.1} parent=1 // pred_fallthru
      _
    // Predicated region
    $region6: #{actor_forward.1} parent=1 // pred_check
      _
    $region7: #{actor_forward.1} parent=1 // pred_check_branch
      %14 = sbr.rel (0) target = $region9
    $region8: #{actor_forward.1} parent=1 // pred_region
      _
    $region9: #{actor_forward.1} parent=1 // pred_fallthru
      _
    // Predicated region
    $region10: #{actor_forward.1} parent=1 // pred_check
      _
    $region11: #{actor_forward.1} parent=1 // pred_check_branch
      %16 = sbr.rel (0) target = $region13
    $region12: #{actor_forward.1} parent=1 // pred_region
      _
    $region13: #{actor_forward.1} parent=1 // pred_fallthru
      _
    // Predicated region
    $region14: #{actor_forward.1} parent=1 // pred_check
      _
    $region15: #{actor_forward.1} parent=1 // pred_check_branch
      %18 = sbr.rel (0) target = $region17
    $region16: #{actor_forward.1} parent=1 // pred_region
      _
    $region17: #{actor_forward.1} parent=1 // pred_fallthru
      _
    // Predicated region
    $region18: #{actor_forward.1} parent=1 // pred_check
      _
    $region19: #{actor_forward.1} parent=1 // pred_check_branch
      %20 = sbr.rel (0) target = $region21
    $region20: #{actor_forward.1} parent=1 // pred_region
      _
    $region21: #{actor_forward.1} parent=1 // pred_fallthru
      _
    %v22 = vld [vmem:[%s0] sm:$0xff]
    %v23 = vpack.c.bf16 %v22, %v22
    %v24 = vld [vmem:[%s1] sm:$0xf]
    %v25 = vld [vmem:[%s1 + $0x4] sm:$0xf]
    %v26 = vld [vmem:[%s1 + $0x8] sm:$0xf]
    %v27 = vld [vmem:[%s1 + $0xc] sm:$0xf]
    %v32 = vunpack.c.l.b16 %v24
    %v33 = vunpack.c.l.b16 %v25
    %v34 = vunpack.c.l.b16 %v26
    %v35 = vunpack.c.l.b16 %v27
    %v36 = vpack.c.b16 %v33, %v32
    %v37 = vpack.c.b16 %v35, %v34
    %vm40 = vcmask 261120
    %v42 = vsel %vm40, %v23, 0
    %44 = vmatprep.subr.bf16.mxu0 0
    %45 = vmatpush1.bf16.msra.mxu0 %v36
    %46 = vmatprep.subr.bf16.mxu0 0
    %47 = vmatpush1.bf16.msra.mxu0 %v37
    %48 = vmatprep.subr.bf16.mxu0 0
    %49 = vmatpush1.bf16.msra.mxu0 0
    %50 = vmatprep.subr.bf16.mxu0 0
    %51 = vmatpush1.bf16.msra.mxu0 0
    %52 = vmatprep.subr.bf16.mxu0 0
    %53 = vmatpush1.bf16.msra.mxu0 0
    %54 = vmatprep.subr.bf16.mxu0 0
    %55 = vmatpush1.bf16.msra.mxu0 0
    %56 = vmatprep.subr.bf16.mxu0 0
    %57 = vmatpush1.bf16.msra.mxu0 0
    %58 = vmatprep.subr.bf16.mxu0 0
    %59 = vmatpush1.bf16.msra.mxu0 0
    %60 = vmatprep.subr.bf16.mxu0 0
    %61 = vmatpush1.bf16.msra.mxu0 0
    %62 = vmatprep.subr.bf16.mxu0 0
    %63 = vmatpush1.bf16.msra.mxu0 0
    %64 = vmatprep.subr.bf16.mxu0 0
    %65 = vmatpush1.bf16.msra.mxu0 0
    %66 = vmatprep.subr.bf16.mxu0 0
    %67 = vmatpush1.bf16.msra.mxu0 0
    %68 = vmatprep.subr.bf16.mxu0 0
    %69 = vmatpush1.bf16.msra.mxu0 0
    %70 = vmatprep.subr.bf16.mxu0 0
    %71 = vmatpush1.bf16.msra.mxu0 0
    %72 = vmatprep.subr.bf16.mxu0 0
    %73 = vmatpush1.bf16.msra.mxu0 0
    %74 = vmatprep.subr.bf16.mxu0 0
    %75 = vmatpush1.bf16.msra.mxu0 0
    %76 = vmatprep.mubr.bf16.mxu0 0
    %77 = vmatmul.mubr.bf16.gmra.mrb[0].mxu0 %v42
    %v78 = vpop.f32.mrb[0].mxu0
    %v79 = vadd.f32 0.0, %v78
    %v80 = vpop.f32.mrb[0].mxu0
    %v81 = vpop.f32.mrb[0].mxu0
    %v82 = vpop.f32.mrb[0].mxu0
    %83 = vdwg.mxu0
    %v84 = vmax.f32 %v79, 0.0
    %v85 = vpack.c.bf16 %v84, %v84
    %v86 = vld [vmem:[%s2] sm:$0xf]
    %v87 = vld [vmem:[%s2 + $0x4] sm:$0xf]
    %v88 = vld [vmem:[%s2 + $0x8] sm:$0xf]
    %v89 = vld [vmem:[%s2 + $0xc] sm:$0xf]
    %v90 = vld [vmem:[%s2 + $0x10] sm:$0xf]
    %v91 = vld [vmem:[%s2 + $0x14] sm:$0xf]
    %v92 = vld [vmem:[%s2 + $0x18] sm:$0xf]
    %v93 = vld [vmem:[%s2 + $0x1c] sm:$0xf]
    %v102 = vunpack.c.l.b16 %v86
    %v103 = vunpack.c.l.b16 %v87
    %v104 = vunpack.c.l.b16 %v88
    %v105 = vunpack.c.l.b16 %v89
    %v106 = vunpack.c.l.b16 %v90
    %v107 = vunpack.c.l.b16 %v91
    %v108 = vunpack.c.l.b16 %v92
    %v109 = vunpack.c.l.b16 %v93
    %v110 = vpack.c.b16 %v103, %v102
    %v111 = vpack.c.b16 %v105, %v104
    %v112 = vpack.c.b16 %v107, %v106
    %v113 = vpack.c.b16 %v109, %v108
    %vm118 = vcmask 523264
    %v120 = vsel %vm118, %v85, 0
    %122 = vmatprep.subr.bf16.mxu0 0
    %123 = vmatpush1.bf16.msra.mxu0 %v110
    %124 = vmatprep.subr.bf16.mxu0 0
    %125 = vmatpush1.bf16.msra.mxu0 %v111
    %126 = vmatprep.subr.bf16.mxu0 0
    %127 = vmatpush1.bf16.msra.mxu0 %v112
    %128 = vmatprep.subr.bf16.mxu0 0
    %129 = vmatpush1.bf16.msra.mxu0 %v113
    %130 = vmatprep.subr.bf16.mxu0 0
    %131 = vmatpush1.bf16.msra.mxu0 0
    %132 = vmatprep.subr.bf16.mxu0 0
    %133 = vmatpush1.bf16.msra.mxu0 0
    %134 = vmatprep.subr.bf16.mxu0 0
    %135 = vmatpush1.bf16.msra.mxu0 0
    %136 = vmatprep.subr.bf16.mxu0 0
    %137 = vmatpush1.bf16.msra.mxu0 0
    %138 = vmatprep.subr.bf16.mxu0 0
    %139 = vmatpush1.bf16.msra.mxu0 0
    %140 = vmatprep.subr.bf16.mxu0 0
    %141 = vmatpush1.bf16.msra.mxu0 0
    %142 = vmatprep.subr.bf16.mxu0 0
    %143 = vmatpush1.bf16.msra.mxu0 0
    %144 = vmatprep.subr.bf16.mxu0 0
    %145 = vmatpush1.bf16.msra.mxu0 0
    %146 = vmatprep.subr.bf16.mxu0 0
    %147 = vmatpush1.bf16.msra.mxu0 0
    %148 = vmatprep.subr.bf16.mxu0 0
    %149 = vmatpush1.bf16.msra.mxu0 0
    %150 = vmatprep.subr.bf16.mxu0 0
    %151 = vmatpush1.bf16.msra.mxu0 0
    %152 = vmatprep.subr.bf16.mxu0 0
    %153 = vmatpush1.bf16.msra.mxu0 0
    %154 = vmatprep.mubr.bf16.mxu0 0
    %155 = vmatmul.mubr.bf16.gmra.mrb[0].mxu0 %v120
    %v156 = vpop.f32.mrb[0].mxu0
    %v157 = vadd.f32 0.0, %v156
    %v158 = vpop.f32.mrb[0].mxu0
    %v159 = vpop.f32.mrb[0].mxu0
    %v160 = vpop.f32.mrb[0].mxu0
    %161 = vdwg.mxu0
    %v162 = vmax.f32 %v157, 0.0
    %v163 = vpack.c.bf16 %v162, %v162
    %v164 = vld [vmem:[%s3] sm:$0xf]
    %v165 = vld [vmem:[%s3 + $0x4] sm:$0xf]
    %v166 = vld [vmem:[%s3 + $0x8] sm:$0xf]
    %v167 = vld [vmem:[%s3 + $0xc] sm:$0xf]
    %v168 = vld [vmem:[%s4] sm:$0x1]
    %v170 = vlaneseq
    %v171 = vshrl.u32 %v170, 7
    %v172 = vsub.s32 0, %v171
    %v173 = vrot.slane %v168, %v172
    %v179 = vunpack.c.l.b16 %v164
    %v180 = vunpack.c.l.b16 %v165
    %v181 = vunpack.c.l.b16 %v166
    %v182 = vunpack.c.l.b16 %v167
    %v183 = vpack.c.b16 %v180, %v179
    %v184 = vpack.c.b16 %v182, %v181
    %v188 = vsel %vm40, %v163, 0
    %190 = vmatprep.subr.bf16.mxu0 0
    %191 = vmatpush1.bf16.msra.mxu0 %v183
    %192 = vmatprep.subr.bf16.mxu0 0
    %193 = vmatpush1.bf16.msra.mxu0 %v184
    %194 = vmatprep.subr.bf16.mxu0 0
    %195 = vmatpush1.bf16.msra.mxu0 0
    %196 = vmatprep.subr.bf16.mxu0 0
    %197 = vmatpush1.bf16.msra.mxu0 0
    %198 = vmatprep.subr.bf16.mxu0 0
    %199 = vmatpush1.bf16.msra.mxu0 0
    %200 = vmatprep.subr.bf16.mxu0 0
    %201 = vmatpush1.bf16.msra.mxu0 0
    %202 = vmatprep.subr.bf16.mxu0 0
    %203 = vmatpush1.bf16.msra.mxu0 0
    %204 = vmatprep.subr.bf16.mxu0 0
    %205 = vmatpush1.bf16.msra.mxu0 0
    %206 = vmatprep.subr.bf16.mxu0 0
    %207 = vmatpush1.bf16.msra.mxu0 0
    %208 = vmatprep.subr.bf16.mxu0 0
    %209 = vmatpush1.bf16.msra.mxu0 0
    %210 = vmatprep.subr.bf16.mxu0 0
    %211 = vmatpush1.bf16.msra.mxu0 0
    %212 = vmatprep.subr.bf16.mxu0 0
    %213 = vmatpush1.bf16.msra.mxu0 0
    %214 = vmatprep.subr.bf16.mxu0 0
    %215 = vmatpush1.bf16.msra.mxu0 0
    %216 = vmatprep.subr.bf16.mxu0 0
    %217 = vmatpush1.bf16.msra.mxu0 0
    %218 = vmatprep.subr.bf16.mxu0 0
    %219 = vmatpush1.bf16.msra.mxu0 0
    %220 = vmatprep.subr.bf16.mxu0 0
    %221 = vmatpush1.bf16.msra.mxu0 0
    %222 = vmatprep.mubr.bf16.mxu0 0
    %223 = vmatmul.mubr.bf16.gmra.mrb[0].mxu0 %v188
    %v224 = vpop.f32.mrb[0].mxu0
    %v225 = vadd.f32 %v173, %v224
    %v226 = vpop.f32.mrb[0].mxu0
    %v227 = vpop.f32.mrb[0].mxu0
    %v228 = vpop.f32.mrb[0].mxu0
    %229 = vdwg.mxu0
    %vm230 = vcmask 130048
    %v231 = vsel %vm230, %v225, -inf
    %232 = vmax.xlane.f32.xlu0 %v231
    %v233 = vpop.xlane.xlu0 %232
    %v234 = vsub.f32 %v225, %v233
    %v235 = vmul.f32 %v234, 1.442695
    %v236 = vpow.pop %v235
    %v237 = vsel %vm230, %v236, 0.0
    %238 = vadd.xlane.f32.xlu0 %v237
    %v239 = vpop.xlane.xlu0 %238
    %v240 = vrcp.pop %v239
    %v241 = vmul.f32 %v236, %v240
    %242 = vst.msk [vmem:[#allocation2] sm:$0xff] %vm230, %v241
    // Predicated region
    $region22: #{actor_forward.1} parent=1 // pred_check
      _
    $region23: #{actor_forward.1} parent=1 // pred_check_branch
      %244 = sbr.rel (0) target = $region25
    $region24: #{actor_forward.1} parent=1 // pred_region
      %s246 = ssub.s32 128, 128
      %247 = vsyncadd [#allocation3], %s246
      %s249 = sshll.u32 [#allocation2], 4
      %s250 = int_to_ptr.vmem [resolvable:$true] %s249
      %252 = dma.vmem_to_hbm [thread:$0]  %s250, 128, %s5, [#allocation3]
    $region25: #{actor_forward.1} parent=1 // pred_fallthru
      _
    // Predicated region
    $region26: #{actor_forward.1} parent=1 // pred_check
      _
    $region27: #{actor_forward.1} parent=1 // pred_check_branch
      %254 = sbr.rel (0) target = $region29
    $region28: #{actor_forward.1} parent=1 // pred_region
      %255 = dma.done [#allocation3], 128
    $region29: #{actor_forward.1} parent=1 // pred_fallthru
      _
    %256 = vsyncpa [#allocation3], 1

</llo_original>
